<compile_context>
chip_gen: v7x
topology: tpu7x:2x2x1
jax: 0.10.0
libtpu: 0.0.40
codegen_flags: <defaults>
</compile_context>

<pallas_src>
import functools
import math

import jax
import jax.numpy as jnp
from jax.experimental import pallas as pl
from jax.experimental.pallas import tpu as pltpu


def sigmoid_rampup(current, rampup_length):
    """Standard mean-teacher sigmoid rampup (exp(-5 * (1 - t)^2))."""
    if rampup_length == 0:
        return 1.0
    current = float(max(0.0, min(float(current), float(rampup_length))))
    phase = 1.0 - current / float(rampup_length)
    return float(math.exp(-5.0 * phase * phase))


def _elr_plus_kernel(out_ref, y_ref, q_ref, ypred_ref, ce_ref, reg_ref,
                     *, batch, tile_b):
    # Tiles are (C, tile_b): classes on sublanes, batch on the lane axis.
    i = pl.program_id(0)

    logits = out_ref[...].astype(jnp.float32)
    y_lab = y_ref[...].astype(jnp.float32)
    q = q_ref[...].astype(jnp.float32)

    # softmax / log_softmax over the class (sublane) axis.
    m = jnp.max(logits, axis=0, keepdims=True)            # (1, tile_b)
    z = logits - m
    e = jnp.exp(z)
    s = jnp.sum(e, axis=0, keepdims=True)                 # (1, tile_b)
    inv_s = pl.reciprocal(s)                               # exact (VPU Newton-Raphson)
    y_pred = e * inv_s
    log_sm = z - jnp.log(s)

    # y_pred = clamp(softmax, 1e-4, 1 - 1e-4); the clamped version is both
    # returned and used in the regularizer, matching the PyTorch code.
    y_pred = jnp.clip(y_pred, 1e-4, 1.0 - 1e-4)

    # Tail-lane mask: the last block may be partial, in which case columns
    # >= batch contain garbage (stale VMEM).  They must not touch the sums;
    # their y_pred columns are clipped on writeback anyway.
    col = i * tile_b + jax.lax.broadcasted_iota(jnp.int32, (1, tile_b), 1)
    valid = col < batch

    # Per-row CE term: -sum_c(y_labeled * log_softmax(output)).
    ce_rows = -jnp.sum(y_lab * log_sm, axis=0, keepdims=True)     # (1, tile_b)
    # Per-row ELR term: log(1 - sum_c(q * y_pred)).  No clamp on (1 - qy),
    # matching the PyTorch num_classes != 100 path (safe since y_pred <= 1-1e-4
    # and q rows are (sub-)stochastic).
    qy = jnp.sum(q * y_pred, axis=0, keepdims=True)               # (1, tile_b)
    reg_rows = jnp.log(1.0 - qy)

    # Lane-reduce inside the kernel (XLU has slack); emit per-block partials.
    ce_part = jnp.sum(jnp.where(valid, ce_rows, 0.0))
    reg_part = jnp.sum(jnp.where(valid, reg_rows, 0.0))

    lane0 = jax.lax.broadcasted_iota(jnp.int32, (1, 128), 1) == 0
    ypred_ref[...] = y_pred.astype(ypred_ref.dtype)
    ce_ref[...] = jnp.where(lane0, ce_part, 0.0)
    reg_ref[...] = jnp.where(lane0, reg_part, 0.0)


def elr_plus_forward(iteration, output, y_labeled, q, config, max_tile_b=None):
    """Pallas implementation of elr_plus_loss.forward (num_classes != 100 path).

    Returns (final_loss, y_pred, None, None, None) like the PyTorch module.
    `max_tile_b` optionally caps the batch tile (mainly for testing the
    multi-block / partial-tail path at small sizes).
    """
    B, C = output.shape
    # TODO(synk): num_classes == 100 branch (y_labeled renormalization by q,
    # which also needs a clamp on (1 - qy) before the log) is not implemented.

    lane = 128
    c_sub = ((C + 7) // 8) * 8            # sublane-padded class count (f32 layout)

    # ~12 MiB VMEM budget spread over ~16 (c_sub, tile_b) f32 block-equivalents:
    # 3 inputs + 1 large output (double-buffered = 8 blocks) plus elementwise
    # temporaries.  Keeps v5e's 16 MiB scoped-VMEM default with headroom while
    # still yielding ~12K-column tiles at C~10.
    vmem_budget = 12 * 1024 * 1024
    col_cap = max(lane, (vmem_budget // (16 * 4 * c_sub)) // lane * lane)
    if max_tile_b is not None:
        col_cap = max(lane, min(col_cap, pl.cdiv(int(max_tile_b), lane) * lane))

    b_up = pl.cdiv(B, lane) * lane
    if b_up <= col_cap:
        # Whole problem fits one block: no per-step pipeline overhead at all.
        tb = b_up
    else:
        nb = pl.cdiv(b_up, col_cap)
        if nb % 2:
            nb += 1  # even block count so v7x's two TCs split the parallel grid
        tb = pl.cdiv(pl.cdiv(b_up, nb), lane) * lane
    num_blocks = pl.cdiv(B, tb)

    # Classes -> sublanes, batch -> lanes (lane-dense compute and stores).
    # TODO(synk): if the producer/consumer can agree on a (C, B) layout these
    # transposes (extra full HBM passes) can be removed entirely.
    out_t = jnp.transpose(output)
    y_t = jnp.transpose(y_labeled)
    q_t = jnp.transpose(q)

    blk_spec = pl.BlockSpec((C, tb), lambda i: (0, i))
    part_spec = pl.BlockSpec((1, lane), lambda i: (0, i))

    kernel = functools.partial(_elr_plus_kernel, batch=B, tile_b=tb)

    y_pred_t, ce_parts, reg_parts = pl.pallas_call(
        kernel,
        out_shape=(
            jax.ShapeDtypeStruct((C, B), output.dtype),             # y_pred (input dtype)
            jax.ShapeDtypeStruct((1, num_blocks * lane), jnp.float32),
            jax.ShapeDtypeStruct((1, num_blocks * lane), jnp.float32),
        ),
        grid=(num_blocks,),
        in_specs=[blk_spec, blk_spec, blk_spec],
        out_specs=(blk_spec, part_spec, part_spec),
        compiler_params=pltpu.CompilerParams(
            dimension_semantics=("parallel",),
        ),
    )(out_t, y_t, q_t)

    # Means over the *true* batch size (tail lanes were masked to 0 in-kernel).
    ce_loss = jnp.sum(ce_parts) / B
    reg = jnp.sum(reg_parts) / B
    y_pred = jnp.transpose(y_pred_t)

    lam = config["train_loss"]["args"]["lambda"]
    ramp = sigmoid_rampup(iteration, config["coef_step"])
    final_loss = ce_loss + ramp * (lam * reg)
    return (final_loss, y_pred, None, None, None)


def _reference_forward(iteration, output, y_labeled, q, config):
    """Pure-JAX reference for sanity checking."""
    y_pred = jax.nn.softmax(output, axis=1)
    y_pred = jnp.clip(y_pred, 1e-4, 1.0 - 1e-4)
    ce = jnp.mean(-jnp.sum(y_labeled * jax.nn.log_softmax(output, axis=1), axis=-1))
    reg = jnp.mean(jnp.log(1.0 - jnp.sum(q * y_pred, axis=1)))
    lam = config["train_loss"]["args"]["lambda"]
    ramp = sigmoid_rampup(iteration, config["coef_step"])
    return ce + ramp * (lam * reg), y_pred


if __name__ == "__main__":
    key = jax.random.PRNGKey(0)
    config = {"coef_step": 100, "train_loss": {"args": {"lambda": 3.0}}}
    iteration = 37

    def make_inputs(k, batch, num_classes):
        k1, k2, k3 = jax.random.split(k, 3)
        logits = jax.random.normal(k1, (batch, num_classes), dtype=jnp.float32)
        labels = jax.random.randint(k2, (batch,), 0, num_classes)
        y_lab = jax.nn.one_hot(labels, num_classes, dtype=jnp.float32)
        # Deterministic "pred_hist"-derived q (row-stochastic), as update_hist
        # would build.
        q_hist = jax.nn.softmax(
            jax.random.normal(k3, (batch, num_classes), dtype=jnp.float32), axis=1)
        return logits, y_lab, q_hist

    ka, kb = jax.random.split(key)

    # Case 1: tiny batch (single, partial block).
    out1, y1, q1 = make_inputs(ka, 8, 10)
    loss1, pred1, _, _, _ = elr_plus_forward(iteration, out1, y1, q1, config)
    jax.block_until_ready(loss1)
    jax.block_until_ready(pred1)
    ref_loss1, ref_pred1 = _reference_forward(iteration, out1, y1, q1, config)
    assert jnp.allclose(loss1, ref_loss1, atol=1e-5, rtol=1e-5), (loss1, ref_loss1)
    assert jnp.allclose(pred1, ref_pred1, atol=1e-6, rtol=1e-5)

    # Case 2: batch not a multiple of 128 with a forced multi-block grid
    # (exercises the partial-tail masking and per-block partial sums).
    out2, y2, q2 = make_inputs(kb, 300, 10)
    loss2, pred2, _, _, _ = elr_plus_forward(
        iteration, out2, y2, q2, config, max_tile_b=128)
    jax.block_until_ready(loss2)
    jax.block_until_ready(pred2)
    ref_loss2, ref_pred2 = _reference_forward(iteration, out2, y2, q2, config)
    assert jnp.allclose(loss2, ref_loss2, atol=1e-5, rtol=1e-5), (loss2, ref_loss2)
    assert jnp.allclose(pred2, ref_pred2, atol=1e-6, rtol=1e-5)

    print("KERNEL_OK")
</pallas_src>

<mosaic_0001>
module attributes {stable_mosaic.version = 11 : i64} {
  func.func @_elr_plus_kernel(%arg0: i32, %arg1: memref<10x128xf32, #tpu.memory_space<vmem>>, %arg2: memref<10x128xf32, #tpu.memory_space<vmem>>, %arg3: memref<10x128xf32, #tpu.memory_space<vmem>>, %arg4: memref<10x128xf32, #tpu.memory_space<vmem>>, %arg5: memref<1x128xf32, #tpu.memory_space<vmem>>, %arg6: memref<1x128xf32, #tpu.memory_space<vmem>>) attributes {dimension_semantics = [#tpu.dimension_semantics<parallel>], iteration_bounds = array<i64: 1>, scalar_prefetch = 0 : i64, scratch_operands = 0 : i64, tpu.core_type = #tpu.core_type<tc>, window_params = [{transform_indices = @transform_0, window_bounds = array<i64: 10, 128>}, {transform_indices = @transform_1, window_bounds = array<i64: 10, 128>}, {transform_indices = @transform_2, window_bounds = array<i64: 10, 128>}, {transform_indices = @transform_3, window_bounds = array<i64: 10, 128>}, {transform_indices = @transform_4, window_bounds = array<i64: 1, 128>}, {transform_indices = @transform_5, window_bounds = array<i64: 1, 128>}]} {
    %c0 = arith.constant 0 : index
    %c0_0 = arith.constant 0 : index
    %0 = vector.load %arg1[%c0, %c0_0] : memref<10x128xf32, #tpu.memory_space<vmem>>, vector<10x128xf32>
    %c0_1 = arith.constant 0 : index
    %c0_2 = arith.constant 0 : index
    %1 = vector.load %arg2[%c0_1, %c0_2] : memref<10x128xf32, #tpu.memory_space<vmem>>, vector<10x128xf32>
    %c0_3 = arith.constant 0 : index
    %c0_4 = arith.constant 0 : index
    %2 = vector.load %arg3[%c0_3, %c0_4] : memref<10x128xf32, #tpu.memory_space<vmem>>, vector<10x128xf32>
    %cst = arith.constant dense<0xFF800000> : vector<128xf32>
    %3 = vector.multi_reduction <maximumf>, %0, %cst [0] : vector<10x128xf32> to vector<128xf32>
    %4 = vector.shape_cast %3 : vector<128xf32> to vector<1x128xf32>
    %5 = vector.broadcast %4 : vector<1x128xf32> to vector<10x128xf32>
    %6 = arith.subf %0, %5 : vector<10x128xf32>
    %7 = math.exp %6 : vector<10x128xf32>
    %cst_5 = arith.constant dense<0.000000e+00> : vector<128xf32>
    %8 = vector.multi_reduction <add>, %7, %cst_5 [0] : vector<10x128xf32> to vector<128xf32>
    %9 = vector.shape_cast %8 : vector<128xf32> to vector<1x128xf32>
    %10 = tpu.reciprocal %9 : vector<1x128xf32> -> vector<1x128xf32>
    %11 = vector.broadcast %10 : vector<1x128xf32> to vector<10x128xf32>
    %12 = arith.mulf %7, %11 : vector<10x128xf32>
    %13 = math.log %9 : vector<1x128xf32>
    %14 = vector.broadcast %13 : vector<1x128xf32> to vector<10x128xf32>
    %15 = arith.subf %6, %14 : vector<10x128xf32>
    %cst_6 = arith.constant 9.99999974E-5 : f32
    %cst_7 = arith.constant 0.999899983 : f32
    %16 = vector.broadcast %cst_6 : f32 to vector<10x128xf32>
    %17 = arith.maximumf %16, %12 : vector<10x128xf32>
    %18 = vector.broadcast %cst_7 : f32 to vector<10x128xf32>
    %19 = arith.minimumf %18, %17 : vector<10x128xf32>
    %c128_i32 = arith.constant 128 : i32
    %20 = arith.muli %arg0, %c128_i32 : i32
    %21 = tpu.iota {dimensions = array<i32: 1>} : vector<1x128xi32>
    %22 = vector.broadcast %20 : i32 to vector<1x128xi32>
    %23 = arith.addi %22, %21 : vector<1x128xi32>
    %c8_i32 = arith.constant 8 : i32
    %24 = vector.broadcast %c8_i32 : i32 to vector<1x128xi32>
    %25 = arith.cmpi slt, %23, %24 : vector<1x128xi32>
    %26 = arith.mulf %1, %15 : vector<10x128xf32>
    %cst_8 = arith.constant dense<0.000000e+00> : vector<128xf32>
    %27 = vector.multi_reduction <add>, %26, %cst_8 [0] : vector<10x128xf32> to vector<128xf32>
    %28 = vector.shape_cast %27 : vector<128xf32> to vector<1x128xf32>
    %cst_9 = arith.constant 0.000000e+00 : f32
    %29 = vector.broadcast %cst_9 : f32 to vector<1x128xf32>
    %30 = arith.subf %29, %28 : vector<1x128xf32>
    %31 = arith.mulf %2, %19 : vector<10x128xf32>
    %cst_10 = arith.constant dense<0.000000e+00> : vector<128xf32>
    %32 = vector.multi_reduction <add>, %31, %cst_10 [0] : vector<10x128xf32> to vector<128xf32>
    %33 = vector.shape_cast %32 : vector<128xf32> to vector<1x128xf32>
    %cst_11 = arith.constant 1.000000e+00 : f32
    %34 = vector.broadcast %cst_11 : f32 to vector<1x128xf32>
    %35 = arith.subf %34, %33 : vector<1x128xf32>
    %36 = math.log %35 : vector<1x128xf32>
    %cst_12 = arith.constant 0.000000e+00 : f32
    %37 = vector.broadcast %cst_12 : f32 to vector<1x128xf32>
    %38 = arith.select %25, %30, %37 : vector<1x128xi1>, vector<1x128xf32>
    %39 = vector.shape_cast %38 : vector<1x128xf32> to vector<1x1x128xf32>
    %cst_13 = arith.constant dense<0.000000e+00> : vector<1xf32>
    %40 = vector.multi_reduction <add>, %39, %cst_13 [1, 2] : vector<1x1x128xf32> to vector<1xf32>
    %41 = vector.shape_cast %40 : vector<1xf32> to vector<1x1x1xf32>
    %42 = vector.extract %41[0, 0, 0] : f32 from vector<1x1x1xf32>
    %cst_14 = arith.constant 0.000000e+00 : f32
    %43 = vector.broadcast %cst_14 : f32 to vector<1x128xf32>
    %44 = arith.select %25, %36, %43 : vector<1x128xi1>, vector<1x128xf32>
    %45 = vector.shape_cast %44 : vector<1x128xf32> to vector<1x1x128xf32>
    %cst_15 = arith.constant dense<0.000000e+00> : vector<1xf32>
    %46 = vector.multi_reduction <add>, %45, %cst_15 [1, 2] : vector<1x1x128xf32> to vector<1xf32>
    %47 = vector.shape_cast %46 : vector<1xf32> to vector<1x1x1xf32>
    %48 = vector.extract %47[0, 0, 0] : f32 from vector<1x1x1xf32>
    %49 = tpu.iota {dimensions = array<i32: 1>} : vector<1x128xi32>
    %c0_i32 = arith.constant 0 : i32
    %50 = vector.broadcast %c0_i32 : i32 to vector<1x128xi32>
    %51 = arith.cmpi eq, %49, %50 : vector<1x128xi32>
    %c0_16 = arith.constant 0 : index
    %c0_17 = arith.constant 0 : index
    %52 = vector.load %arg4[%c0_16, %c0_17] : memref<10x128xf32, #tpu.memory_space<vmem>>, vector<10x128xf32>
    tpu.vector_store %arg4[%c0_16, %c0_17], %19 {strides = array<i32>} : memref<10x128xf32, #tpu.memory_space<vmem>>, vector<10x128xf32>,
    %cst_18 = arith.constant 0.000000e+00 : f32
    %53 = vector.broadcast %42 : f32 to vector<1x128xf32>
    %54 = vector.broadcast %cst_18 : f32 to vector<1x128xf32>
    %55 = arith.select %51, %53, %54 : vector<1x128xi1>, vector<1x128xf32>
    %c0_19 = arith.constant 0 : index
    %c0_20 = arith.constant 0 : index
    %56 = vector.load %arg5[%c0_19, %c0_20] : memref<1x128xf32, #tpu.memory_space<vmem>>, vector<1x128xf32>
    tpu.vector_store %arg5[%c0_19, %c0_20], %55 {strides = array<i32>} : memref<1x128xf32, #tpu.memory_space<vmem>>, vector<1x128xf32>,
    %cst_21 = arith.constant 0.000000e+00 : f32
    %57 = vector.broadcast %48 : f32 to vector<1x128xf32>
    %58 = vector.broadcast %cst_21 : f32 to vector<1x128xf32>
    %59 = arith.select %51, %57, %58 : vector<1x128xi1>, vector<1x128xf32>
    %c0_22 = arith.constant 0 : index
    %c0_23 = arith.constant 0 : index
    %60 = vector.load %arg6[%c0_22, %c0_23] : memref<1x128xf32, #tpu.memory_space<vmem>>, vector<1x128xf32>
    tpu.vector_store %arg6[%c0_22, %c0_23], %59 {strides = array<i32>} : memref<1x128xf32, #tpu.memory_space<vmem>>, vector<1x128xf32>,
    return
  }
  func.func @transform_0(%arg0: i32) -> (i32, i32) {
    %c0_i32 = arith.constant 0 : i32
    %c0_i32_0 = arith.constant 0 : i32
    return %c0_i32, %arg0 : i32, i32
  }
  func.func @transform_1(%arg0: i32) -> (i32, i32) {
    %c0_i32 = arith.constant 0 : i32
    %c0_i32_0 = arith.constant 0 : i32
    return %c0_i32, %arg0 : i32, i32
  }
  func.func @transform_2(%arg0: i32) -> (i32, i32) {
    %c0_i32 = arith.constant 0 : i32
    %c0_i32_0 = arith.constant 0 : i32
    return %c0_i32, %arg0 : i32, i32
  }
  func.func @transform_3(%arg0: i32) -> (i32, i32) {
    %c0_i32 = arith.constant 0 : i32
    %c0_i32_0 = arith.constant 0 : i32
    return %c0_i32, %arg0 : i32, i32
  }
  func.func @transform_4(%arg0: i32) -> (i32, i32) {
    %c0_i32 = arith.constant 0 : i32
    %c0_i32_0 = arith.constant 0 : i32
    return %c0_i32, %arg0 : i32, i32
  }
  func.func @transform_5(%arg0: i32) -> (i32, i32) {
    %c0_i32 = arith.constant 0 : i32
    %c0_i32_0 = arith.constant 0 : i32
    return %c0_i32, %arg0 : i32, i32
  }
}

</mosaic_0001>

<llo_original>
// kernel: tpu_custom_call.1
$region0: #{tpu_custom_call.1}
  #allocation0 [shape = 'u32[]', space=smem, size = 0x4, offset = 0x4, fixed_abs, tag = 'smem constant byte address 0x4 - core index']
  #allocation1 [shape = 'u32[144,128]{1,0:T(1,128)}', space=vmem, size = 0x12000, scoped, tag = 'internal scratch']
  %s0 = inlined_call_operand.vmem [shape: f32[10,8], index: 0, kind: input, shape index: {}]
  %s1 = inlined_call_operand.vmem [shape: f32[10,8], index: 1, kind: input, shape index: {}]
  %s2 = inlined_call_operand.vmem [shape: f32[10,8], index: 2, kind: input, shape index: {}]
  %s3 = inlined_call_operand.vmem [shape: f32[10,8], index: 3, kind: output, shape index: {0}]
  %s4 = inlined_call_operand.hbm [shape: f32[1,128], index: 4, kind: output, shape index: {1}]
  %s5 = inlined_call_operand.hbm [shape: f32[1,128], index: 5, kind: output, shape index: {2}]
  %6 = xla_tuple %s3, %s4, %s5
  %s7 = sld [smem:[#allocation0]]
  $region38: #{tpu_custom_call.1} parent=0
    _
  %s9 = ssub.s32 1, %s7
  %s10 = scalar_select 0, %s9, %s7
  $region1: #{tpu_custom_call.1} parent=0
    #allocation2 [shape = 'u8[512]{0}', space=vmem, size = 0x400, scoped, tag = 'output window, operand 1, single buffered']
    #allocation3 [shape = 's32[1]{0}', space=sflag, size = 0x4, scoped, tag = 'scoped memory for tpu_custom_call.1']
    #allocation4 [shape = 'u8[512]{0}', space=vmem, size = 0x400, scoped, tag = 'output window, operand 2, single buffered']
    #allocation5 [shape = 's32[1]{0}', space=sflag, size = 0x4, scoped, tag = 'scoped memory for tpu_custom_call.1']
    %11 = vsyncpa [#allocation3], 0
    %12 = vsyncpa [#allocation5], 0
    // Predicated region
    $region2: #{tpu_custom_call.1} parent=1 // pred_check
      _
    $region3: #{tpu_custom_call.1} parent=1 // pred_check_branch
      %14 = sbr.rel (0) target = $region5
    $region4: #{tpu_custom_call.1} parent=1 // pred_region
      _
    $region5: #{tpu_custom_call.1} parent=1 // pred_fallthru
      _
    // Predicated region
    $region6: #{tpu_custom_call.1} parent=1 // pred_check
      _
    $region7: #{tpu_custom_call.1} parent=1 // pred_check_branch
      %16 = sbr.rel (0) target = $region9
    $region8: #{tpu_custom_call.1} parent=1 // pred_region
      _
    $region9: #{tpu_custom_call.1} parent=1 // pred_fallthru
      _
    // Predicated region
    $region10: #{tpu_custom_call.1} parent=1 // pred_check
      _
    $region11: #{tpu_custom_call.1} parent=1 // pred_check_branch
      %18 = sbr.rel (0) target = $region13
    $region12: #{tpu_custom_call.1} parent=1 // pred_region
      _
    $region13: #{tpu_custom_call.1} parent=1 // pred_fallthru
      _
    %v19 = vld [vmem:[%s0] sm:$0xff]
    %v20 = vld [vmem:[%s0 + $0x8] sm:$0x3]
    %v21 = vld [vmem:[%s1] sm:$0xff]
    %v22 = vld [vmem:[%s1 + $0x8] sm:$0x3]
    %v23 = vld [vmem:[%s2] sm:$0xff]
    %v24 = vld [vmem:[%s2 + $0x8] sm:$0x3]
    %vm25 = vcmask 1041408
    %v26 = vsel %vm25, %v20, -inf
    %v27 = vmax.f32 %v19, %v26
    %v28 = vrot.slane %v27, 4
    %v29 = vmax.f32 %v27, %v28
    %v30 = vrot.slane %v29, 2
    %v31 = vmax.f32 %v29, %v30
    %v32 = vrot.slane %v31, 1
    %v33 = vmax.f32 %v31, %v32
    %v34 = vsub.f32 %v19, %v33
    %v35 = vsub.f32 %v20, %v33
    %v36 = vmul.f32 %v34, 1.442695
    %v37 = vpow.pop %v36
    %v38 = vmul.f32 %v35, 1.442695
    %v39 = vpow.pop %v38
    %v40 = vsel %vm25, %v39, 0.0
    %v41 = vadd.f32 %v37, %v40
    %v42 = vrot.slane %v41, 4
    %v43 = vadd.f32 %v41, %v42
    %v44 = vrot.slane %v43, 2
    %v45 = vadd.f32 %v43, %v44
    %v46 = vrot.slane %v45, 1
    %v47 = vadd.f32 %v45, %v46
    %v48 = vrcp.pop %v47
    %v49 = vmul.f32 %v37, %v48
    %v50 = vmul.f32 %v39, %v48
    %v51 = vlog2.pop %v47
    %v52 = vmul.f32 %v51, 0.6931472
    %v53 = vsub.f32 %v34, %v52
    %v54 = vsub.f32 %v35, %v52
    %v55 = vmax.f32 %v49, 0.0001
    %v56 = vmax.f32 %v50, 0.0001
    %v57 = vmin.f32 %v55, 0.9999
    %v58 = vmin.f32 %v56, 0.9999
    %s59 = smul.u32 0, 128
    %v60 = vlaneseq
    %v61 = vand.u32 %v60, 127
    %v62 = vstv %s59
    %v63 = vadd.s32 %v62, %v61
    %vm64 = vcmp.lt.s32.totalorder %v63, 8
    %v65 = vmul.f32 %v21, %v53
    %v66 = vmul.f32 %v22, %v54
    %v67 = vsel %vm25, %v66, 0.0
    %v68 = vadd.f32 %v65, %v67
    %v69 = vrot.slane %v68, 4
    %v70 = vadd.f32 %v68, %v69
    %v71 = vrot.slane %v70, 2
    %v72 = vadd.f32 %v70, %v71
    %v73 = vrot.slane %v72, 1
    %v74 = vadd.f32 %v72, %v73
    %v75 = vsub.f32 0.0, %v74
    %v76 = vmul.f32 %v23, %v57
    %v77 = vmul.f32 %v24, %v58
    %v78 = vsel %vm25, %v77, 0.0
    %v79 = vadd.f32 %v76, %v78
    %v80 = vrot.slane %v79, 4
    %v81 = vadd.f32 %v79, %v80
    %v82 = vrot.slane %v81, 2
    %v83 = vadd.f32 %v81, %v82
    %v84 = vrot.slane %v83, 1
    %v85 = vadd.f32 %v83, %v84
    %v86 = vsub.f32 1.0, %v85
    %v87 = vlog2.pop %v86
    %v88 = vmul.f32 %v87, 0.6931472
    %v89 = vsel %vm64, %v75, 0.0
    %vm90 = vcmask 1040384
    %v91 = vsel %vm90, %v89, 0.0
    %92 = vadd.xlane.f32.xlu0 %v91
    %v93 = vpop.xlane.xlu0 %92
    %v94 = vrot.slane %v93, 4
    %v95 = vadd.f32 %v93, %v94
    %v96 = vrot.slane %v95, 2
    %v97 = vadd.f32 %v95, %v96
    %v98 = vrot.slane %v97, 1
    %v99 = vadd.f32 %v97, %v98
    %s100 = vtos %v99
    %v101 = vsel %vm64, %v88, 0.0
    %v102 = vsel %vm90, %v101, 0.0
    %103 = vadd.xlane.f32.xlu0 %v102
    %v104 = vpop.xlane.xlu0 %103
    %v105 = vrot.slane %v104, 4
    %v106 = vadd.f32 %v104, %v105
    %v107 = vrot.slane %v106, 2
    %v108 = vadd.f32 %v106, %v107
    %v109 = vrot.slane %v108, 1
    %v110 = vadd.f32 %v108, %v109
    %s111 = vtos %v110
    %vm112 = vcmp.eq.s32.totalorder %v61, 0
    %113 = vst [vmem:[%s3] sm:$0xff] %v57
    %114 = vst [vmem:[%s3 + $0x8] sm:$0x3] %v58
    %v115 = vstv %s100
    %v116 = vsel %vm112, %v115, 0.0
    %117 = vst [vmem:[#allocation2] sm:$0x1] %v116
    %v118 = vstv %s111
    %v119 = vsel %vm112, %v118, 0.0
    %120 = vst [vmem:[#allocation4] sm:$0x1] %v119
    // Predicated region
    $region14: #{tpu_custom_call.1} parent=1 // pred_check
      _
    $region15: #{tpu_custom_call.1} parent=1 // pred_check_branch
      %122 = sbr.rel (0) target = $region17
    $region16: #{tpu_custom_call.1} parent=1 // pred_region
      _
    $region17: #{tpu_custom_call.1} parent=1 // pred_fallthru
      _
    // Predicated region
    $region18: #{tpu_custom_call.1} parent=1 // pred_check
      _
    $region19: #{tpu_custom_call.1} parent=1 // pred_check_branch
      %124 = sbr.rel (0) target = $region21
    $region20: #{tpu_custom_call.1} parent=1 // pred_region
      %s126 = ssub.s32 16, 16
      %127 = vsyncadd [#allocation3], %s126
      %s129 = sshll.u32 [#allocation2], 4
      %s130 = int_to_ptr.vmem [resolvable:$true] %s129
      %132 = dma.vmem_to_hbm [thread:$0]  %s130, 16, %s4, [#allocation3]
    $region21: #{tpu_custom_call.1} parent=1 // pred_fallthru
      _
    // Predicated region
    $region22: #{tpu_custom_call.1} parent=1 // pred_check
      _
    $region23: #{tpu_custom_call.1} parent=1 // pred_check_branch
      %134 = sbr.rel (0) target = $region25
    $region24: #{tpu_custom_call.1} parent=1 // pred_region
      %s136 = ssub.s32 16, 16
      %137 = vsyncadd [#allocation5], %s136
      %s139 = sshll.u32 [#allocation4], 4
      %s140 = int_to_ptr.vmem [resolvable:$true] %s139
      %142 = dma.vmem_to_hbm [thread:$0]  %s140, 16, %s5, [#allocation5]
    $region25: #{tpu_custom_call.1} parent=1 // pred_fallthru
      _
    // Predicated region
    $region26: #{tpu_custom_call.1} parent=1 // pred_check
      _
    $region27: #{tpu_custom_call.1} parent=1 // pred_check_branch
      %144 = sbr.rel (0) target = $region29
    $region28: #{tpu_custom_call.1} parent=1 // pred_region
      _
    $region29: #{tpu_custom_call.1} parent=1 // pred_fallthru
      _
    // Predicated region
    $region30: #{tpu_custom_call.1} parent=1 // pred_check
      _
    $region31: #{tpu_custom_call.1} parent=1 // pred_check_branch
      %146 = sbr.rel (0) target = $region33
    $region32: #{tpu_custom_call.1} parent=1 // pred_region
      %147 = dma.done [#allocation3], 16
    $region33: #{tpu_custom_call.1} parent=1 // pred_fallthru
      _
    // Predicated region
    $region34: #{tpu_custom_call.1} parent=1 // pred_check
      _
    $region35: #{tpu_custom_call.1} parent=1 // pred_check_branch
      %149 = sbr.rel (0) target = $region37
    $region36: #{tpu_custom_call.1} parent=1 // pred_region
      %150 = dma.done [#allocation5], 16
    $region37: #{tpu_custom_call.1} parent=1 // pred_fallthru
      _
    %151 = vsyncpa [#allocation3], 1
    %152 = vsyncpa [#allocation5], 1

</llo_original>
